<compile_context>
chip_gen: v7x
topology: tpu7x:2x2x1
jax: 0.10.0
libtpu: 0.0.40
codegen_flags: <defaults>
</compile_context>

<pallas_src>
import functools

import jax
import jax.numpy as jnp
from jax.experimental import pallas as pl
from jax.experimental.pallas import tpu as pltpu


# --------------------------------------------------------------------------- #
# Small helpers
# --------------------------------------------------------------------------- #
def _prod(xs):
    out = 1
    for v in xs:
        out *= int(v)
    return out


def _round_up(x, m):
    return ((x + m - 1) // m) * m


@functools.lru_cache(maxsize=None)
def _vmem_capacity_bytes():
    """Physical VMEM of the local chip; conservative (v7x) fallback if unknown."""
    try:
        cap = int(getattr(pltpu.get_tpu_info(), "vmem_capacity_bytes"))
        if cap > 0:
            return cap
    except Exception:
        pass
    return 64 << 20  # v7x physical VMEM -> safe cap on every generation


def _tile_budget_bytes():
    # ~1/16 of physical VMEM per buffer (in + out double-buffered ~ 1/4 total):
    #   v5e/v6e (128 MiB) -> 8 MiB per buffer, v7x (64 MiB) -> 4 MiB.
    cap = _vmem_capacity_bytes()
    return max(1 << 20, min(8 << 20, cap // 16))


def _padded_block_bytes(shape, itemsize):
    """Conservative VMEM footprint of a block ((8,128) tiling on the minor dims)."""
    dims = list(shape)
    if len(dims) >= 1:
        dims[-1] = _round_up(dims[-1], 128)
    if len(dims) >= 2:
        dims[-2] = _round_up(dims[-2], 8)
    return _prod(dims) * itemsize


def _compiler_params(grid, max_block_bytes):
    cap = _vmem_capacity_bytes()
    kwargs = dict(dimension_semantics=("parallel",) * len(grid))
    # TODO(synk): on v7x, lead the grid with the largest independent axis and use
    #   pltpu.CORE_PARALLEL (or pl.core_map) to guarantee a dual-TensorCore split.
    needed = 4 * max_block_bytes + (8 << 20)  # in + out, double-buffered + headroom
    if needed > (16 << 20):
        # Never request more than ~3/4 of this chip's physical VMEM (v7x: 64 MiB).
        kwargs["vmem_limit_bytes"] = int(min(needed, (cap * 3) // 4))
    return pltpu.CompilerParams(**kwargs)


# --------------------------------------------------------------------------- #
# Tile pickers: prefer exact divisors; fall back to a capped tile + pl.cdiv grid
# (Pallas masks the remainder block), so awkward dims stay within VMEM budgets.
# --------------------------------------------------------------------------- #
def _pick_dim_tile(dim, unit_bytes, budget, align):
    if dim * unit_bytes <= budget:
        return dim
    max_tile = max(align, (budget // max(unit_bytes, 1)) // align * align)
    if dim <= max_tile:
        return dim
    best = 0
    for t in range(align, max_tile + 1, align):
        if dim % t == 0:
            best = t
    return best if best else max_tile  # cdiv grid + masked remainder block


def _pick_lane_tile(dim, max_tile):
    if dim <= max_tile:
        return dim
    cap = max(128, (max_tile // 128) * 128)
    best = 0
    for t in range(128, cap + 1, 128):
        if dim % t == 0:
            best = t
    return best if best else cap  # cdiv grid + masked remainder block


def _pick_major_tile(dim, unit_bytes, budget, cap):
    limit = max(1, min(cap, budget // max(unit_bytes, 1)))
    if dim <= limit:
        return dim
    best = 1
    for t in range(2, limit + 1):
        if dim % t == 0:
            best = t
    return best


def _pick_b_tile(B, t_bytes, unroll_cap=32):
    """Rows of B folded per block: multiple of 8 (or all of B), <= unroll_cap."""
    if B <= unroll_cap:
        return B
    cap = min(unroll_cap, (B // 8) * 8)
    best = 0
    for t in range(8, cap + 1, 8):
        if B % t == 0:
            best = t
    if best and best * t_bytes >= 512:
        return best
    return cap  # cdiv grid + masked remainder block


# --------------------------------------------------------------------------- #
# Kernel bodies (copies, unrolled slice copies, 2-D minor transposes only)
# --------------------------------------------------------------------------- #
def _copy_kernel(x_ref, o_ref):
    # Pure copy: the axis swap is fully expressed by the grid / index maps.
    o_ref[...] = x_ref[...]


def _make_bfold_kernel(b_tile):
    def kernel(x_ref, o_ref):
        # x_ref: (a_tile, b_tile, T)   o_ref: (b_tile, a_tile, T)
        # Scattered reads on the (3 vld/cycle) load side, wide contiguous stores.
        for b in range(b_tile):  # static unroll: pure slice copies
            o_ref[b] = x_ref[:, b]
    return kernel


def _make_tile_transpose_kernel(l_tile):
    def kernel(x_ref, o_ref):
        # x_ref: (l_tile, a_tile, b_tile)   o_ref: (l_tile, b_tile, a_tile)
        # TODO(synk): for bf16/int8 inputs, bitcast lane pairs/quads to uint32
        #   and transpose as 32-bit to avoid packed-dtype relayout chains.
        for i in range(l_tile):  # static unroll of 2-D XLU tile transposes
            o_ref[i] = x_ref[i].T
    return kernel


# --------------------------------------------------------------------------- #
# The three dispatch paths
# --------------------------------------------------------------------------- #
def _transpose_small_t(x, out_shape, L, A, M, B, T, itemsize, budget):
    # Case A (lane axis untouched), small trailing row: fold b_tile rows of B
    # into each block -> contiguous >=512 B input DMA chunks, ~b_tile x fewer
    # grid steps; the A<->B swap happens on-chip with unrolled slice copies.
    b_tile = _pick_b_tile(B, T * itemsize)
    row_bytes = _round_up(b_tile, 8) * _round_up(T, 128) * itemsize
    a_tile = _pick_dim_tile(A, row_bytes, budget, align=8)

    x_v = x.reshape(L, A, M, B, T)
    grid = (L, M, pl.cdiv(A, a_tile), pl.cdiv(B, b_tile))

    in_spec = pl.BlockSpec(
        (pl.Squeezed(), a_tile, pl.Squeezed(), b_tile, T),
        lambda l, m, a, b: (l, a, m, b, 0),
    )
    out_spec = pl.BlockSpec(
        (pl.Squeezed(), b_tile, pl.Squeezed(), a_tile, T),
        lambda l, m, a, b: (l, b, m, a, 0),
    )
    block_bytes = max(
        _padded_block_bytes((a_tile, b_tile, T), itemsize),
        _padded_block_bytes((b_tile, a_tile, T), itemsize),
    )
    out_v = pl.pallas_call(
        _make_bfold_kernel(b_tile),
        out_shape=jax.ShapeDtypeStruct((L, B, M, A, T), x.dtype),
        grid_spec=pltpu.PrefetchScalarGridSpec(
            num_scalar_prefetch=0, grid=grid,
            in_specs=[in_spec], out_specs=out_spec),
        compiler_params=_compiler_params(grid, block_bytes),
    )(x_v)
    return out_v.reshape(out_shape)


def _transpose_large_t(x, out_shape, L, A, M, B, T, itemsize, budget):
    # Case A, large trailing row (>= 512 B): the swap is expressed purely by the
    # grid + index maps; the body is a lane-dense block copy.
    # TODO(synk): this pure-copy case could skip VMEM entirely with
    #   memory_space=pl.ANY + direct HBM->HBM pltpu.make_async_copy slices.
    t_tile = _pick_lane_tile(T, max(128, budget // max(8 * itemsize, 1)))
    a_tile = _pick_dim_tile(A, t_tile * itemsize, budget, align=8)

    x_v = x.reshape(L, A, M, B, 1, T)
    grid = (L, B, M, pl.cdiv(A, a_tile), pl.cdiv(T, t_tile))

    in_spec = pl.BlockSpec(
        (pl.Squeezed(), a_tile, pl.Squeezed(), pl.Squeezed(), pl.Squeezed(), t_tile),
        lambda l, b, m, a, t: (l, a, m, b, 0, t),
    )
    out_spec = pl.BlockSpec(
        (pl.Squeezed(), pl.Squeezed(), pl.Squeezed(), a_tile, t_tile),
        lambda l, b, m, a, t: (l, b, m, a, t),
    )
    block_bytes = _padded_block_bytes((a_tile, t_tile), itemsize)
    out_v = pl.pallas_call(
        _copy_kernel,
        out_shape=jax.ShapeDtypeStruct((L, B, M, A, T), x.dtype),
        grid_spec=pltpu.PrefetchScalarGridSpec(
            num_scalar_prefetch=0, grid=grid,
            in_specs=[in_spec], out_specs=out_spec),
        compiler_params=_compiler_params(grid, block_bytes),
    )(x_v)
    return out_v.reshape(out_shape)


def _transpose_last_dim(x, out_shape, L, A, M, B, itemsize, budget):
    # Case B: the lane (minor) axis itself is swapped -> batched 2-D tile
    # transposes on the XLU; l_tile leading tiles are folded into each block so
    # small tensors run in O(1) grid steps.
    # TODO(synk): on v7x (3.2 TB/s HBM, 2 XLUs) this path can turn XLU-bound;
    #   routing the transpose through the idle MXU or CORE_PARALLEL dual-TC
    #   sharding would restore HBM-roofline throughput.
    max_side = 512 if budget <= (2 << 20) else 1024
    a_tile = _pick_lane_tile(A, max_side)
    b_tile = _pick_lane_tile(B, max_side)
    tile_bytes = _round_up(max(a_tile, b_tile), 8) * _round_up(max(a_tile, b_tile), 128) * itemsize
    l_tile = _pick_major_tile(L, tile_bytes, budget, cap=8)

    x_v = x.reshape(L, A, M, 1, B)
    grid = (pl.cdiv(L, l_tile), M, pl.cdiv(A, a_tile), pl.cdiv(B, b_tile))

    in_spec = pl.BlockSpec(
        (l_tile, a_tile, pl.Squeezed(), pl.Squeezed(), b_tile),
        lambda l, m, a, b: (l, a, m, 0, b),
    )
    out_spec = pl.BlockSpec(
        (l_tile, b_tile, pl.Squeezed(), pl.Squeezed(), a_tile),
        lambda l, m, a, b: (l, b, m, 0, a),
    )
    block_bytes = max(
        _padded_block_bytes((l_tile, a_tile, b_tile), itemsize),
        _padded_block_bytes((l_tile, b_tile, a_tile), itemsize),
    )
    out_v = pl.pallas_call(
        _make_tile_transpose_kernel(l_tile),
        out_shape=jax.ShapeDtypeStruct((L, B, M, 1, A), x.dtype),
        grid_spec=pltpu.PrefetchScalarGridSpec(
            num_scalar_prefetch=0, grid=grid,
            in_specs=[in_spec], out_specs=out_spec),
        compiler_params=_compiler_params(grid, block_bytes),
    )(x_v)
    return out_v.reshape(out_shape)


# --------------------------------------------------------------------------- #
# Public wrapper (forward pass of the PyTorch module)
# --------------------------------------------------------------------------- #
def pallas_transpose(x, dim1: int, dim2: int):
    """Equivalent of torch.Tensor.transpose(dim1, dim2) as Pallas TPU kernels."""
    ndim = x.ndim
    dim1 = dim1 % ndim
    dim2 = dim2 % ndim
    if dim1 == dim2:
        return x
    if dim1 > dim2:
        dim1, dim2 = dim2, dim1

    shape = x.shape
    out_shape = list(shape)
    out_shape[dim1], out_shape[dim2] = out_shape[dim2], out_shape[dim1]
    out_shape = tuple(out_shape)

    L = _prod(shape[:dim1])            # untouched leading dims
    A = int(shape[dim1])               # first swapped axis
    M = _prod(shape[dim1 + 1:dim2])    # untouched middle dims
    B = int(shape[dim2])               # second swapped axis
    T = _prod(shape[dim2 + 1:])        # untouched trailing (lane) dims
    itemsize = x.dtype.itemsize
    budget = _tile_budget_bytes()

    if dim2 == ndim - 1:
        return _transpose_last_dim(x, out_shape, L, A, M, B, itemsize, budget)
    if T * itemsize < 512:
        return _transpose_small_t(x, out_shape, L, A, M, B, T, itemsize, budget)
    return _transpose_large_t(x, out_shape, L, A, M, B, T, itemsize, budget)


if __name__ == "__main__":
    key = jax.random.PRNGKey(0)

    def check(arr, d1, d2):
        got = jax.block_until_ready(pallas_transpose(arr, d1, d2))
        ref = jnp.swapaxes(arr, d1, d2)
        assert got.shape == ref.shape and got.dtype == ref.dtype
        assert bool(jnp.array_equal(got, ref))

    # Small NCHW feature tensor.
    x = jax.random.normal(key, (2, 4, 16, 16), dtype=jnp.float32)
    check(x, 1, 2)   # swap C,H -> small-T folded copy path (2 grid steps)
    check(x, 2, 3)   # swap H,W -> batched 2-D tile-transpose path (1 grid step)
    check(x, 0, 2)   # swap N,H -> small-T folded path with a middle dim (M > 1)

    # Large trailing row (>= 512 B) -> lane-dense pure-copy path.
    x2 = jax.random.normal(key, (2, 8, 16, 128), dtype=jnp.float32)
    check(x2, 0, 1)

    # Awkward dim (B = 50 has no multiple-of-8 divisor <= 32) -> capped tile +
    # pl.cdiv grid with a masked remainder block.
    x3 = jax.random.normal(key, (2, 6, 50, 8), dtype=jnp.float32)
    check(x3, 1, 2)

    print("KERNEL_OK")
</pallas_src>

<mosaic_0001>
module attributes {stable_mosaic.version = 11 : i64} {
  func.func @kernel(%arg0: i32, %arg1: i32, %arg2: i32, %arg3: i32, %arg4: memref<1x4x1x16x16xf32, #tpu.memory_space<vmem>>, %arg5: memref<1x16x1x4x16xf32, #tpu.memory_space<vmem>>) attributes {dimension_semantics = [#tpu.dimension_semantics<parallel>, #tpu.dimension_semantics<parallel>, #tpu.dimension_semantics<parallel>, #tpu.dimension_semantics<parallel>], iteration_bounds = array<i64: 2, 1, 1, 1>, scalar_prefetch = 0 : i64, scratch_operands = 0 : i64, tpu.core_type = #tpu.core_type<tc>, window_params = [{transform_indices = @transform_0, window_bounds = array<i64: 1, 4, 1, 16, 16>}, {transform_indices = @transform_1, window_bounds = array<i64: 1, 16, 1, 4, 16>}]} {
    %c0 = arith.constant 0 : index
    %c0_0 = arith.constant 0 : index
    %c0_1 = arith.constant 0 : index
    %c0_2 = arith.constant 0 : index
    %c0_3 = arith.constant 0 : index
    %0 = vector.load %arg4[%c0, %c0_0, %c0_1, %c0_2, %c0_3] : memref<1x4x1x16x16xf32, #tpu.memory_space<vmem>>, vector<1x4x1x1x16xf32>
    %1 = vector.shape_cast %0 : vector<1x4x1x1x16xf32> to vector<4x16xf32>
    %c0_4 = arith.constant 0 : index
    %c0_5 = arith.constant 0 : index
    %c0_6 = arith.constant 0 : index
    %c0_7 = arith.constant 0 : index
    %c0_8 = arith.constant 0 : index
    %2 = vector.load %arg5[%c0_4, %c0_5, %c0_6, %c0_7, %c0_8] : memref<1x16x1x4x16xf32, #tpu.memory_space<vmem>>, vector<1x1x1x4x16xf32>
    %3 = vector.shape_cast %2 : vector<1x1x1x4x16xf32> to vector<4x16xf32>
    %4 = vector.shape_cast %1 : vector<4x16xf32> to vector<1x1x1x4x16xf32>
    tpu.vector_store %arg5[%c0_4, %c0_5, %c0_6, %c0_7, %c0_8], %4 {strides = array<i32>} : memref<1x16x1x4x16xf32, #tpu.memory_space<vmem>>, vector<1x1x1x4x16xf32>,
    %c0_9 = arith.constant 0 : index
    %c0_10 = arith.constant 0 : index
    %c0_11 = arith.constant 0 : index
    %c1 = arith.constant 1 : index
    %c0_12 = arith.constant 0 : index
    %5 = vector.load %arg4[%c0_9, %c0_10, %c0_11, %c1, %c0_12] : memref<1x4x1x16x16xf32, #tpu.memory_space<vmem>>, vector<1x4x1x1x16xf32>
    %6 = vector.shape_cast %5 : vector<1x4x1x1x16xf32> to vector<4x16xf32>
    %c0_13 = arith.constant 0 : index
    %c1_14 = arith.constant 1 : index
    %c0_15 = arith.constant 0 : index
    %c0_16 = arith.constant 0 : index
    %c0_17 = arith.constant 0 : index
    %7 = vector.load %arg5[%c0_13, %c1_14, %c0_15, %c0_16, %c0_17] : memref<1x16x1x4x16xf32, #tpu.memory_space<vmem>>, vector<1x1x1x4x16xf32>
    %8 = vector.shape_cast %7 : vector<1x1x1x4x16xf32> to vector<4x16xf32>
    %9 = vector.shape_cast %6 : vector<4x16xf32> to vector<1x1x1x4x16xf32>
    tpu.vector_store %arg5[%c0_13, %c1_14, %c0_15, %c0_16, %c0_17], %9 {strides = array<i32>} : memref<1x16x1x4x16xf32, #tpu.memory_space<vmem>>, vector<1x1x1x4x16xf32>,
    %c0_18 = arith.constant 0 : index
    %c0_19 = arith.constant 0 : index
    %c0_20 = arith.constant 0 : index
    %c2 = arith.constant 2 : index
    %c0_21 = arith.constant 0 : index
    %10 = vector.load %arg4[%c0_18, %c0_19, %c0_20, %c2, %c0_21] : memref<1x4x1x16x16xf32, #tpu.memory_space<vmem>>, vector<1x4x1x1x16xf32>
    %11 = vector.shape_cast %10 : vector<1x4x1x1x16xf32> to vector<4x16xf32>
    %c0_22 = arith.constant 0 : index
    %c2_23 = arith.constant 2 : index
    %c0_24 = arith.constant 0 : index
    %c0_25 = arith.constant 0 : index
    %c0_26 = arith.constant 0 : index
    %12 = vector.load %arg5[%c0_22, %c2_23, %c0_24, %c0_25, %c0_26] : memref<1x16x1x4x16xf32, #tpu.memory_space<vmem>>, vector<1x1x1x4x16xf32>
    %13 = vector.shape_cast %12 : vector<1x1x1x4x16xf32> to vector<4x16xf32>
    %14 = vector.shape_cast %11 : vector<4x16xf32> to vector<1x1x1x4x16xf32>
    tpu.vector_store %arg5[%c0_22, %c2_23, %c0_24, %c0_25, %c0_26], %14 {strides = array<i32>} : memref<1x16x1x4x16xf32, #tpu.memory_space<vmem>>, vector<1x1x1x4x16xf32>,
    %c0_27 = arith.constant 0 : index
    %c0_28 = arith.constant 0 : index
    %c0_29 = arith.constant 0 : index
    %c3 = arith.constant 3 : index
    %c0_30 = arith.constant 0 : index
    %15 = vector.load %arg4[%c0_27, %c0_28, %c0_29, %c3, %c0_30] : memref<1x4x1x16x16xf32, #tpu.memory_space<vmem>>, vector<1x4x1x1x16xf32>
    %16 = vector.shape_cast %15 : vector<1x4x1x1x16xf32> to vector<4x16xf32>
    %c0_31 = arith.constant 0 : index
    %c3_32 = arith.constant 3 : index
    %c0_33 = arith.constant 0 : index
    %c0_34 = arith.constant 0 : index
    %c0_35 = arith.constant 0 : index
    %17 = vector.load %arg5[%c0_31, %c3_32, %c0_33, %c0_34, %c0_35] : memref<1x16x1x4x16xf32, #tpu.memory_space<vmem>>, vector<1x1x1x4x16xf32>
    %18 = vector.shape_cast %17 : vector<1x1x1x4x16xf32> to vector<4x16xf32>
    %19 = vector.shape_cast %16 : vector<4x16xf32> to vector<1x1x1x4x16xf32>
    tpu.vector_store %arg5[%c0_31, %c3_32, %c0_33, %c0_34, %c0_35], %19 {strides = array<i32>} : memref<1x16x1x4x16xf32, #tpu.memory_space<vmem>>, vector<1x1x1x4x16xf32>,
    %c0_36 = arith.constant 0 : index
    %c0_37 = arith.constant 0 : index
    %c0_38 = arith.constant 0 : index
    %c4 = arith.constant 4 : index
    %c0_39 = arith.constant 0 : index
    %20 = vector.load %arg4[%c0_36, %c0_37, %c0_38, %c4, %c0_39] : memref<1x4x1x16x16xf32, #tpu.memory_space<vmem>>, vector<1x4x1x1x16xf32>
    %21 = vector.shape_cast %20 : vector<1x4x1x1x16xf32> to vector<4x16xf32>
    %c0_40 = arith.constant 0 : index
    %c4_41 = arith.constant 4 : index
    %c0_42 = arith.constant 0 : index
    %c0_43 = arith.constant 0 : index
    %c0_44 = arith.constant 0 : index
    %22 = vector.load %arg5[%c0_40, %c4_41, %c0_42, %c0_43, %c0_44] : memref<1x16x1x4x16xf32, #tpu.memory_space<vmem>>, vector<1x1x1x4x16xf32>
    %23 = vector.shape_cast %22 : vector<1x1x1x4x16xf32> to vector<4x16xf32>
    %24 = vector.shape_cast %21 : vector<4x16xf32> to vector<1x1x1x4x16xf32>
    tpu.vector_store %arg5[%c0_40, %c4_41, %c0_42, %c0_43, %c0_44], %24 {strides = array<i32>} : memref<1x16x1x4x16xf32, #tpu.memory_space<vmem>>, vector<1x1x1x4x16xf32>,
    %c0_45 = arith.constant 0 : index
    %c0_46 = arith.constant 0 : index
    %c0_47 = arith.constant 0 : index
    %c5 = arith.constant 5 : index
    %c0_48 = arith.constant 0 : index
    %25 = vector.load %arg4[%c0_45, %c0_46, %c0_47, %c5, %c0_48] : memref<1x4x1x16x16xf32, #tpu.memory_space<vmem>>, vector<1x4x1x1x16xf32>
    %26 = vector.shape_cast %25 : vector<1x4x1x1x16xf32> to vector<4x16xf32>
    %c0_49 = arith.constant 0 : index
    %c5_50 = arith.constant 5 : index
    %c0_51 = arith.constant 0 : index
    %c0_52 = arith.constant 0 : index
    %c0_53 = arith.constant 0 : index
    %27 = vector.load %arg5[%c0_49, %c5_50, %c0_51, %c0_52, %c0_53] : memref<1x16x1x4x16xf32, #tpu.memory_space<vmem>>, vector<1x1x1x4x16xf32>
    %28 = vector.shape_cast %27 : vector<1x1x1x4x16xf32> to vector<4x16xf32>
    %29 = vector.shape_cast %26 : vector<4x16xf32> to vector<1x1x1x4x16xf32>
    tpu.vector_store %arg5[%c0_49, %c5_50, %c0_51, %c0_52, %c0_53], %29 {strides = array<i32>} : memref<1x16x1x4x16xf32, #tpu.memory_space<vmem>>, vector<1x1x1x4x16xf32>,
    %c0_54 = arith.constant 0 : index
    %c0_55 = arith.constant 0 : index
    %c0_56 = arith.constant 0 : index
    %c6 = arith.constant 6 : index
    %c0_57 = arith.constant 0 : index
    %30 = vector.load %arg4[%c0_54, %c0_55, %c0_56, %c6, %c0_57] : memref<1x4x1x16x16xf32, #tpu.memory_space<vmem>>, vector<1x4x1x1x16xf32>
    %31 = vector.shape_cast %30 : vector<1x4x1x1x16xf32> to vector<4x16xf32>
    %c0_58 = arith.constant 0 : index
    %c6_59 = arith.constant 6 : index
    %c0_60 = arith.constant 0 : index
    %c0_61 = arith.constant 0 : index
    %c0_62 = arith.constant 0 : index
    %32 = vector.load %arg5[%c0_58, %c6_59, %c0_60, %c0_61, %c0_62] : memref<1x16x1x4x16xf32, #tpu.memory_space<vmem>>, vector<1x1x1x4x16xf32>
    %33 = vector.shape_cast %32 : vector<1x1x1x4x16xf32> to vector<4x16xf32>
    %34 = vector.shape_cast %31 : vector<4x16xf32> to vector<1x1x1x4x16xf32>
    tpu.vector_store %arg5[%c0_58, %c6_59, %c0_60, %c0_61, %c0_62], %34 {strides = array<i32>} : memref<1x16x1x4x16xf32, #tpu.memory_space<vmem>>, vector<1x1x1x4x16xf32>,
    %c0_63 = arith.constant 0 : index
    %c0_64 = arith.constant 0 : index
    %c0_65 = arith.constant 0 : index
    %c7 = arith.constant 7 : index
    %c0_66 = arith.constant 0 : index
    %35 = vector.load %arg4[%c0_63, %c0_64, %c0_65, %c7, %c0_66] : memref<1x4x1x16x16xf32, #tpu.memory_space<vmem>>, vector<1x4x1x1x16xf32>
    %36 = vector.shape_cast %35 : vector<1x4x1x1x16xf32> to vector<4x16xf32>
    %c0_67 = arith.constant 0 : index
    %c7_68 = arith.constant 7 : index
    %c0_69 = arith.constant 0 : index
    %c0_70 = arith.constant 0 : index
    %c0_71 = arith.constant 0 : index
    %37 = vector.load %arg5[%c0_67, %c7_68, %c0_69, %c0_70, %c0_71] : memref<1x16x1x4x16xf32, #tpu.memory_space<vmem>>, vector<1x1x1x4x16xf32>
    %38 = vector.shape_cast %37 : vector<1x1x1x4x16xf32> to vector<4x16xf32>
    %39 = vector.shape_cast %36 : vector<4x16xf32> to vector<1x1x1x4x16xf32>
    tpu.vector_store %arg5[%c0_67, %c7_68, %c0_69, %c0_70, %c0_71], %39 {strides = array<i32>} : memref<1x16x1x4x16xf32, #tpu.memory_space<vmem>>, vector<1x1x1x4x16xf32>,
    %c0_72 = arith.constant 0 : index
    %c0_73 = arith.constant 0 : index
    %c0_74 = arith.constant 0 : index
    %c8 = arith.constant 8 : index
    %c0_75 = arith.constant 0 : index
    %40 = vector.load %arg4[%c0_72, %c0_73, %c0_74, %c8, %c0_75] : memref<1x4x1x16x16xf32, #tpu.memory_space<vmem>>, vector<1x4x1x1x16xf32>
    %41 = vector.shape_cast %40 : vector<1x4x1x1x16xf32> to vector<4x16xf32>
    %c0_76 = arith.constant 0 : index
    %c8_77 = arith.constant 8 : index
    %c0_78 = arith.constant 0 : index
    %c0_79 = arith.constant 0 : index
    %c0_80 = arith.constant 0 : index
    %42 = vector.load %arg5[%c0_76, %c8_77, %c0_78, %c0_79, %c0_80] : memref<1x16x1x4x16xf32, #tpu.memory_space<vmem>>, vector<1x1x1x4x16xf32>
    %43 = vector.shape_cast %42 : vector<1x1x1x4x16xf32> to vector<4x16xf32>
    %44 = vector.shape_cast %41 : vector<4x16xf32> to vector<1x1x1x4x16xf32>
    tpu.vector_store %arg5[%c0_76, %c8_77, %c0_78, %c0_79, %c0_80], %44 {strides = array<i32>} : memref<1x16x1x4x16xf32, #tpu.memory_space<vmem>>, vector<1x1x1x4x16xf32>,
    %c0_81 = arith.constant 0 : index
    %c0_82 = arith.constant 0 : index
    %c0_83 = arith.constant 0 : index
    %c9 = arith.constant 9 : index
    %c0_84 = arith.constant 0 : index
    %45 = vector.load %arg4[%c0_81, %c0_82, %c0_83, %c9, %c0_84] : memref<1x4x1x16x16xf32, #tpu.memory_space<vmem>>, vector<1x4x1x1x16xf32>
    %46 = vector.shape_cast %45 : vector<1x4x1x1x16xf32> to vector<4x16xf32>
    %c0_85 = arith.constant 0 : index
    %c9_86 = arith.constant 9 : index
    %c0_87 = arith.constant 0 : index
    %c0_88 = arith.constant 0 : index
    %c0_89 = arith.constant 0 : index
    %47 = vector.load %arg5[%c0_85, %c9_86, %c0_87, %c0_88, %c0_89] : memref<1x16x1x4x16xf32, #tpu.memory_space<vmem>>, vector<1x1x1x4x16xf32>
    %48 = vector.shape_cast %47 : vector<1x1x1x4x16xf32> to vector<4x16xf32>
    %49 = vector.shape_cast %46 : vector<4x16xf32> to vector<1x1x1x4x16xf32>
    tpu.vector_store %arg5[%c0_85, %c9_86, %c0_87, %c0_88, %c0_89], %49 {strides = array<i32>} : memref<1x16x1x4x16xf32, #tpu.memory_space<vmem>>, vector<1x1x1x4x16xf32>,
    %c0_90 = arith.constant 0 : index
    %c0_91 = arith.constant 0 : index
    %c0_92 = arith.constant 0 : index
    %c10 = arith.constant 10 : index
    %c0_93 = arith.constant 0 : index
    %50 = vector.load %arg4[%c0_90, %c0_91, %c0_92, %c10, %c0_93] : memref<1x4x1x16x16xf32, #tpu.memory_space<vmem>>, vector<1x4x1x1x16xf32>
    %51 = vector.shape_cast %50 : vector<1x4x1x1x16xf32> to vector<4x16xf32>
    %c0_94 = arith.constant 0 : index
    %c10_95 = arith.constant 10 : index
    %c0_96 = arith.constant 0 : index
    %c0_97 = arith.constant 0 : index
    %c0_98 = arith.constant 0 : index
    %52 = vector.load %arg5[%c0_94, %c10_95, %c0_96, %c0_97, %c0_98] : memref<1x16x1x4x16xf32, #tpu.memory_space<vmem>>, vector<1x1x1x4x16xf32>
    %53 = vector.shape_cast %52 : vector<1x1x1x4x16xf32> to vector<4x16xf32>
    %54 = vector.shape_cast %51 : vector<4x16xf32> to vector<1x1x1x4x16xf32>
    tpu.vector_store %arg5[%c0_94, %c10_95, %c0_96, %c0_97, %c0_98], %54 {strides = array<i32>} : memref<1x16x1x4x16xf32, #tpu.memory_space<vmem>>, vector<1x1x1x4x16xf32>,
    %c0_99 = arith.constant 0 : index
    %c0_100 = arith.constant 0 : index
    %c0_101 = arith.constant 0 : index
    %c11 = arith.constant 11 : index
    %c0_102 = arith.constant 0 : index
    %55 = vector.load %arg4[%c0_99, %c0_100, %c0_101, %c11, %c0_102] : memref<1x4x1x16x16xf32, #tpu.memory_space<vmem>>, vector<1x4x1x1x16xf32>
    %56 = vector.shape_cast %55 : vector<1x4x1x1x16xf32> to vector<4x16xf32>
    %c0_103 = arith.constant 0 : index
    %c11_104 = arith.constant 11 : index
    %c0_105 = arith.constant 0 : index
    %c0_106 = arith.constant 0 : index
    %c0_107 = arith.constant 0 : index
    %57 = vector.load %arg5[%c0_103, %c11_104, %c0_105, %c0_106, %c0_107] : memref<1x16x1x4x16xf32, #tpu.memory_space<vmem>>, vector<1x1x1x4x16xf32>
    %58 = vector.shape_cast %57 : vector<1x1x1x4x16xf32> to vector<4x16xf32>
    %59 = vector.shape_cast %56 : vector<4x16xf32> to vector<1x1x1x4x16xf32>
    tpu.vector_store %arg5[%c0_103, %c11_104, %c0_105, %c0_106, %c0_107], %59 {strides = array<i32>} : memref<1x16x1x4x16xf32, #tpu.memory_space<vmem>>, vector<1x1x1x4x16xf32>,
    %c0_108 = arith.constant 0 : index
    %c0_109 = arith.constant 0 : index
    %c0_110 = arith.constant 0 : index
    %c12 = arith.constant 12 : index
    %c0_111 = arith.constant 0 : index
    %60 = vector.load %arg4[%c0_108, %c0_109, %c0_110, %c12, %c0_111] : memref<1x4x1x16x16xf32, #tpu.memory_space<vmem>>, vector<1x4x1x1x16xf32>
    %61 = vector.shape_cast %60 : vector<1x4x1x1x16xf32> to vector<4x16xf32>
    %c0_112 = arith.constant 0 : index
    %c12_113 = arith.constant 12 : index
    %c0_114 = arith.constant 0 : index
    %c0_115 = arith.constant 0 : index
    %c0_116 = arith.constant 0 : index
    %62 = vector.load %arg5[%c0_112, %c12_113, %c0_114, %c0_115, %c0_116] : memref<1x16x1x4x16xf32, #tpu.memory_space<vmem>>, vector<1x1x1x4x16xf32>
    %63 = vector.shape_cast %62 : vector<1x1x1x4x16xf32> to vector<4x16xf32>
    %64 = vector.shape_cast %61 : vector<4x16xf32> to vector<1x1x1x4x16xf32>
    tpu.vector_store %arg5[%c0_112, %c12_113, %c0_114, %c0_115, %c0_116], %64 {strides = array<i32>} : memref<1x16x1x4x16xf32, #tpu.memory_space<vmem>>, vector<1x1x1x4x16xf32>,
    %c0_117 = arith.constant 0 : index
    %c0_118 = arith.constant 0 : index
    %c0_119 = arith.constant 0 : index
    %c13 = arith.constant 13 : index
    %c0_120 = arith.constant 0 : index
    %65 = vector.load %arg4[%c0_117, %c0_118, %c0_119, %c13, %c0_120] : memref<1x4x1x16x16xf32, #tpu.memory_space<vmem>>, vector<1x4x1x1x16xf32>
    %66 = vector.shape_cast %65 : vector<1x4x1x1x16xf32> to vector<4x16xf32>
    %c0_121 = arith.constant 0 : index
    %c13_122 = arith.constant 13 : index
    %c0_123 = arith.constant 0 : index
    %c0_124 = arith.constant 0 : index
    %c0_125 = arith.constant 0 : index
    %67 = vector.load %arg5[%c0_121, %c13_122, %c0_123, %c0_124, %c0_125] : memref<1x16x1x4x16xf32, #tpu.memory_space<vmem>>, vector<1x1x1x4x16xf32>
    %68 = vector.shape_cast %67 : vector<1x1x1x4x16xf32> to vector<4x16xf32>
    %69 = vector.shape_cast %66 : vector<4x16xf32> to vector<1x1x1x4x16xf32>
    tpu.vector_store %arg5[%c0_121, %c13_122, %c0_123, %c0_124, %c0_125], %69 {strides = array<i32>} : memref<1x16x1x4x16xf32, #tpu.memory_space<vmem>>, vector<1x1x1x4x16xf32>,
    %c0_126 = arith.constant 0 : index
    %c0_127 = arith.constant 0 : index
    %c0_128 = arith.constant 0 : index
    %c14 = arith.constant 14 : index
    %c0_129 = arith.constant 0 : index
    %70 = vector.load %arg4[%c0_126, %c0_127, %c0_128, %c14, %c0_129] : memref<1x4x1x16x16xf32, #tpu.memory_space<vmem>>, vector<1x4x1x1x16xf32>
    %71 = vector.shape_cast %70 : vector<1x4x1x1x16xf32> to vector<4x16xf32>
    %c0_130 = arith.constant 0 : index
    %c14_131 = arith.constant 14 : index
    %c0_132 = arith.constant 0 : index
    %c0_133 = arith.constant 0 : index
    %c0_134 = arith.constant 0 : index
    %72 = vector.load %arg5[%c0_130, %c14_131, %c0_132, %c0_133, %c0_134] : memref<1x16x1x4x16xf32, #tpu.memory_space<vmem>>, vector<1x1x1x4x16xf32>
    %73 = vector.shape_cast %72 : vector<1x1x1x4x16xf32> to vector<4x16xf32>
    %74 = vector.shape_cast %71 : vector<4x16xf32> to vector<1x1x1x4x16xf32>
    tpu.vector_store %arg5[%c0_130, %c14_131, %c0_132, %c0_133, %c0_134], %74 {strides = array<i32>} : memref<1x16x1x4x16xf32, #tpu.memory_space<vmem>>, vector<1x1x1x4x16xf32>,
    %c0_135 = arith.constant 0 : index
    %c0_136 = arith.constant 0 : index
    %c0_137 = arith.constant 0 : index
    %c15 = arith.constant 15 : index
    %c0_138 = arith.constant 0 : index
    %75 = vector.load %arg4[%c0_135, %c0_136, %c0_137, %c15, %c0_138] : memref<1x4x1x16x16xf32, #tpu.memory_space<vmem>>, vector<1x4x1x1x16xf32>
    %76 = vector.shape_cast %75 : vector<1x4x1x1x16xf32> to vector<4x16xf32>
    %c0_139 = arith.constant 0 : index
    %c15_140 = arith.constant 15 : index
    %c0_141 = arith.constant 0 : index
    %c0_142 = arith.constant 0 : index
    %c0_143 = arith.constant 0 : index
    %77 = vector.load %arg5[%c0_139, %c15_140, %c0_141, %c0_142, %c0_143] : memref<1x16x1x4x16xf32, #tpu.memory_space<vmem>>, vector<1x1x1x4x16xf32>
    %78 = vector.shape_cast %77 : vector<1x1x1x4x16xf32> to vector<4x16xf32>
    %79 = vector.shape_cast %76 : vector<4x16xf32> to vector<1x1x1x4x16xf32>
    tpu.vector_store %arg5[%c0_139, %c15_140, %c0_141, %c0_142, %c0_143], %79 {strides = array<i32>} : memref<1x16x1x4x16xf32, #tpu.memory_space<vmem>>, vector<1x1x1x4x16xf32>,
    return
  }
  func.func @transform_0(%arg0: i32, %arg1: i32, %arg2: i32, %arg3: i32) -> (i32, i32, i32, i32, i32) {
    %c0_i32 = arith.constant 0 : i32
    %c0_i32_0 = arith.constant 0 : i32
    return %arg0, %arg2, %arg1, %arg3, %c0_i32 : i32, i32, i32, i32, i32
  }
  func.func @transform_1(%arg0: i32, %arg1: i32, %arg2: i32, %arg3: i32) -> (i32, i32, i32, i32, i32) {
    %c0_i32 = arith.constant 0 : i32
    %c0_i32_0 = arith.constant 0 : i32
    return %arg0, %arg3, %arg1, %arg2, %c0_i32 : i32, i32, i32, i32, i32
  }
}

</mosaic_0001>

<llo_original>
// kernel: tpu_custom_call.1
$region0: #{tpu_custom_call.1}
  #allocation0 [shape = 'u32[]', space=smem, size = 0x4, offset = 0x4, fixed_abs, tag = 'smem constant byte address 0x4 - core index']
  #allocation1 [shape = 'u32[144,128]{1,0:T(1,128)}', space=vmem, size = 0x12000, scoped, tag = 'internal scratch']
  %s0 = inlined_call_operand.hbm [shape: f32[2,4,1,16,16], index: 0, kind: input, shape index: {}]
  %s1 = inlined_call_operand.hbm [shape: f32[2,16,1,4,16], index: 1, kind: output, shape index: {}]
  %s2 = sld [smem:[#allocation0]]
  $region41: #{tpu_custom_call.1} parent=0
    _
  %s4 = ssub.s32 1, %s2
  %s5 = scalar_select 0, %s4, %s2
  $region1: #{tpu_custom_call.1} parent=0
    #allocation2 [shape = 'u8[65536]{0}', space=vmem, size = 0x10000, scoped, tag = 'input window, operand 0']
    #allocation3 [shape = 's32[2]{0}', space=sflag, size = 0x8, scoped, tag = 'scoped memory for tpu_custom_call.1']
    #allocation4 [shape = 's32[2]{0}', space=sflag, size = 0x8, scoped, tag = 'scoped memory for tpu_custom_call.1']
    #allocation5 [shape = 'u8[65536]{0}', space=vmem, size = 0x10000, scoped, tag = 'output window, operand 0']
    %6 = vsyncpa [#allocation3], 0
    %s7 = scalar_lea.sflag [#allocation3], 1
    %8 = vsyncpa %s7, 0
    %9 = vsyncpa [#allocation4], 0
    %s10 = scalar_lea.sflag [#allocation4], 1
    %11 = vsyncpa %s10, 0
    loop: start=0, step=1, limit=4
    $region2: #{tpu_custom_call.1} parent=1 // loop_pre_header
      _
    $region3: #{tpu_custom_call.1} parent=1 // loop_header
      %s13 = sphi 0, %s17
      %p14 = scmp.ge.s32.totalorder %s13, 4
      %s20 = sphi 0, %s46
      %s21 = sphi 0, %s42
      %s22 = sphi 0, %s38
      %s23 = sphi 0, %s34
      %s24 = sphi 0, %s20
      %s25 = sphi 0, %s21
      %s26 = sphi 0, %s22
      %s27 = sphi 0, %s23
      %s28 = sphi 0, %s24
      %s29 = sphi 0, %s25
      %s30 = sphi 0, %s26
      %s31 = sphi 0, %s27
      %s55 = sphi 0, %s57
      %s58 = sphi 0, %s55
      %s59 = sphi 0, %s58
      %s75 = sphi 0, %s59
      %s87 = sphi 0, %s89
      %s90 = sphi 0, %s87
      %s91 = sphi 0, %s90
      %s107 = sphi 0, %s91
    $region4: #{tpu_custom_call.1} parent=1 // loop_header_branch
      %16 = sbr.rel (%p14) target = $region8
    $region5: #{tpu_custom_call.1} parent=1 // loop_body
      %s18 = ssub.s32 %s13, 1
      %s19 = ssub.s32 %s13, 2
      %s32 = sadd.s32 1, %s23
      %p33 = scmp.ge.s32.totalorder %s32, 1
      %s34 = scalar_select %p33, 0, %s32
      %s35 = sadd.s32 1, %s22
      %s36 = scalar_select %p33, %s35, %s22
      %p37 = scmp.ge.s32.totalorder %s36, 1
      %s38 = scalar_select %p37, 0, %s36
      %s39 = sadd.s32 1, %s21
      %s40 = scalar_select %p37, %s39, %s21
      %p41 = scmp.ge.s32.totalorder %s40, 1
      %s42 = scalar_select %p41, 0, %s40
      %s43 = sadd.s32 1, %s20
      %s44 = scalar_select %p41, %s43, %s20
      %p45 = scmp.ge.s32.totalorder %s44, 2
      %s46 = scalar_select %p45, 0, %s44
      %s47 = ssub.s32 %s20, %s46
      %s48 = ssub.s32 %s22, %s38
      %s49 = sor.u32 %s47, %s48
      %s50 = ssub.s32 %s21, %s42
      %s51 = sor.u32 %s49, %s50
      %s52 = ssub.s32 %s23, %s34
      %s53 = sor.u32 %s51, %s52
      %p54 = scmp.eq.s32.totalorder %s53, 0
      %s56 = sadd.s32 %s55, 1
      %s57 = scalar_select %p54, %s55, %s56
      %p60 = pneg %p54
      %p61 = scmp.eq.s32.totalorder %s13, 1
      %p62 = por %p60, %p61
      %p63 = scmp.ne.s32.totalorder %s55, %s58
      %p64 = scmp.eq.s32.totalorder %s13, 0
      %p65 = por %p63, %p64
      %p66 = scmp.ne.s32.totalorder %s55, %s58
      %p67 = scmp.eq.s32.totalorder %s18, 1
      %p68 = por %p66, %p67
      %p69 = scmp.ne.s32.totalorder %s58, %s59
      %p70 = scmp.eq.s32.totalorder %s18, 0
      %p71 = por %p69, %p70
      %p72 = scmp.ne.s32.totalorder %s58, %s59
      %p73 = scmp.eq.s32.totalorder %s19, 1
      %p74 = por %p72, %p73
      %p76 = scmp.ne.s32.totalorder %s59, %s75
      %p77 = scmp.eq.s32.totalorder %s19, 0
      %p78 = por %p76, %p77
      %s79 = ssub.s32 %s20, %s46
      %s80 = ssub.s32 %s23, %s34
      %s81 = sor.u32 %s79, %s80
      %s82 = ssub.s32 %s21, %s42
      %s83 = sor.u32 %s81, %s82
      %s84 = ssub.s32 %s22, %s38
      %s85 = sor.u32 %s83, %s84
      %p86 = scmp.eq.s32.totalorder %s85, 0
      %s88 = sadd.s32 %s87, 1
      %s89 = scalar_select %p86, %s87, %s88
      %p92 = pneg %p86
      %p93 = scmp.eq.s32.totalorder %s13, 1
      %p94 = por %p92, %p93
      %p95 = scmp.ne.s32.totalorder %s87, %s90
      %p96 = scmp.eq.s32.totalorder %s13, 0
      %p97 = por %p95, %p96
      %p98 = scmp.ne.s32.totalorder %s87, %s90
      %p99 = scmp.eq.s32.totalorder %s18, 1
      %p100 = por %p98, %p99
      %p101 = scmp.ne.s32.totalorder %s90, %s91
      %p102 = scmp.eq.s32.totalorder %s18, 0
      %p103 = por %p101, %p102
      %p104 = scmp.ne.s32.totalorder %s90, %s91
      %p105 = scmp.eq.s32.totalorder %s19, 1
      %p106 = por %p104, %p105
      %p108 = scmp.ne.s32.totalorder %s91, %s107
      %p109 = scmp.eq.s32.totalorder %s19, 0
      %p110 = por %p108, %p109
      %p111 = scmp.le.s32.totalorder 1, %s13
      %p112 = scmp.lt.s32.totalorder %s13, 3
      %p113 = pnand %p111, %p112
      %p114 = pneg %p113
      // Predicated region
      $region9: #{tpu_custom_call.1} parent=5 // pred_check
        _
      $region10: #{tpu_custom_call.1} parent=5 // pred_check_branch
        %116 = sbr.rel (%p113) target = $region12
      $region11: #{tpu_custom_call.1} parent=5 // pred_region
        %s117 = ssub.s32 %s13, 1
      $region12: #{tpu_custom_call.1} parent=5 // pred_fallthru
        _
      %p118 = scmp.lt.s32.totalorder %s13, 2
      // Predicated region
      $region13: #{tpu_custom_call.1} parent=5 // pred_check
        %p119 = pneg %p118
      $region14: #{tpu_custom_call.1} parent=5 // pred_check_branch
        %121 = sbr.rel (%p119) target = $region16
      $region15: #{tpu_custom_call.1} parent=5 // pred_region
        // Predicated region
        $region17: #{tpu_custom_call.1} parent=15 // pred_check
          %p122 = pneg %p65
        $region18: #{tpu_custom_call.1} parent=15 // pred_check_branch
          %124 = sbr.rel (%p122) target = $region20
        $region19: #{tpu_custom_call.1} parent=15 // pred_region
          %s125 = sand.u32 %s55, 1
          %s126 = scalar_lea.sflag [#allocation3], %s125
          %s127 = sand.u32 %s55, 1
          %s128 = smul.addr %s127, 64
          %s129 = scalar_lea.vmem [#allocation2], %s128
          %s130 = smul.u32 4, %s22
          %s131 = smul.u32 2, %s23
          %s133 = ssub.s32 1024, 1024
          %134 = vsyncadd %s126, %s133
          %s135 = smul.addr %s21, 2
          %s136 = sadd.s32 %s131, %s135
          %s137 = smul.addr %s130, 2
          %s138 = sadd.s32 %s136, %s137
          %s139 = smul.addr %s20, 8
          %s140 = sadd.s32 %s138, %s139
          %s141 = smul.addr %s140, 128
          %s142 = scalar_lea.hbm %s0, %s141
          %s143 = sshll.u32 %s129, 4
          %s144 = int_to_ptr.vmem [resolvable:$true] %s143
          %149 = dma.hbm_to_vmem [thread:$0]  %s142, 1024, %s144, %s126, 128, 128, 8
        $region20: #{tpu_custom_call.1} parent=15 // pred_fallthru
          _
      $region16: #{tpu_custom_call.1} parent=5 // pred_fallthru
        _
      %p150 = scmp.le.s32.totalorder 1, %s13
      %p151 = scmp.lt.s32.totalorder %s13, 3
      %p152 = pnand %p150, %p151
      %p153 = pneg %p152
      // Predicated region
      $region21: #{tpu_custom_call.1} parent=5 // pred_check
        _
      $region22: #{tpu_custom_call.1} parent=5 // pred_check_branch
        %155 = sbr.rel (%p152) target = $region24
      $region23: #{tpu_custom_call.1} parent=5 // pred_region
        %s156 = ssub.s32 %s13, 1
        %s157 = sand.u32 %s58, 1
        %s158 = scalar_lea.sflag [#allocation3], %s157
        %s159 = sand.u32 %s58, 1
        %s160 = smul.addr %s159, 64
        %s161 = scalar_lea.vmem [#allocation2], %s160
        // Predicated region
        $region25: #{tpu_custom_call.1} parent=23 // pred_check
          %p162 = pneg %p71
        $region26: #{tpu_custom_call.1} parent=23 // pred_check_branch
          %164 = sbr.rel (%p162) target = $region28
        $region27: #{tpu_custom_call.1} parent=23 // pred_region
          %165 = dma.done %s158, 1024
        $region28: #{tpu_custom_call.1} parent=23 // pred_fallthru
          _
        %s166 = sand.u32 %s58, 1
        %s167 = scalar_lea.sflag [#allocation3], %s166
        %s168 = sand.u32 %s58, 1
        %s169 = smul.addr %s168, 64
        %s170 = scalar_lea.vmem [#allocation2], %s169
        %p171 = pneg %p71
        %p172 = pneg %p68
        %p173 = pneg %p103
        %p174 = pneg %p100
        %s175 = sand.u32 %s90, 1
        %s176 = scalar_lea.sflag [#allocation4], %s175
        %s177 = sand.u32 %s90, 1
        %s178 = smul.addr %s177, 64
        %s179 = scalar_lea.vmem [#allocation5], %s178
        %s180 = smul.u32 4, %s26
        %s181 = smul.u32 2, %s27
        %s182 = smul.u32 16, %s27
        %v183 = vld [vmem:[%s161] sm:$0x1]
        %v184 = vld [vmem:[%s161 + $0x10] sm:$0x1]
        %v185 = vld [vmem:[%s161 + $0x20] sm:$0x1]
        %v186 = vld [vmem:[%s161 + $0x30] sm:$0x1]
        %v191 = vrot.slane %v184, 7
        %vm192 = vcmask 1041409
        %v193 = vsel %vm192, %v191, %v183
        %v194 = vrot.slane %v185, 6
        %vm195 = vcmask 1042434
        %v196 = vsel %vm195, %v194, %v193
        %v197 = vrot.slane %v186, 5
        %vm198 = vcmask 1043459
        %v199 = vsel %vm198, %v197, %v196
        %vm201 = vcmask 125952
        %202 = vst.msk [vmem:[%s179] sm:$0xf] %vm201, %v199
        %v203 = vld [vmem:[%s161 + $0x1] sm:$0x1]
        %v204 = vld [vmem:[%s161 + $0x11] sm:$0x1]
        %v205 = vld [vmem:[%s161 + $0x21] sm:$0x1]
        %v206 = vld [vmem:[%s161 + $0x31] sm:$0x1]
        %v211 = vrot.slane %v204, 7
        %v212 = vsel %vm192, %v211, %v203
        %v213 = vrot.slane %v205, 6
        %v214 = vsel %vm195, %v213, %v212
        %v215 = vrot.slane %v206, 5
        %v216 = vsel %vm198, %v215, %v214
        %s218 = scalar_lea.vmem %s179, 4 [#allocation5]
        %219 = vst.msk [vmem:[%s218] sm:$0xf] %vm201, %v216
        %v220 = vld [vmem:[%s161 + $0x2] sm:$0x1]
        %v221 = vld [vmem:[%s161 + $0x12] sm:$0x1]
        %v222 = vld [vmem:[%s161 + $0x22] sm:$0x1]
        %v223 = vld [vmem:[%s161 + $0x32] sm:$0x1]
        %v228 = vrot.slane %v221, 7
        %v229 = vsel %vm192, %v228, %v220
        %v230 = vrot.slane %v222, 6
        %v231 = vsel %vm195, %v230, %v229
        %v232 = vrot.slane %v223, 5
        %v233 = vsel %vm198, %v232, %v231
        %s235 = scalar_lea.vmem %s179, 8 [#allocation5]
        %236 = vst.msk [vmem:[%s235] sm:$0xf] %vm201, %v233
        %v237 = vld [vmem:[%s161 + $0x3] sm:$0x1]
        %v238 = vld [vmem:[%s161 + $0x13] sm:$0x1]
        %v239 = vld [vmem:[%s161 + $0x23] sm:$0x1]
        %v240 = vld [vmem:[%s161 + $0x33] sm:$0x1]
        %v245 = vrot.slane %v238, 7
        %v246 = vsel %vm192, %v245, %v237
        %v247 = vrot.slane %v239, 6
        %v248 = vsel %vm195, %v247, %v246
        %v249 = vrot.slane %v240, 5
        %v250 = vsel %vm198, %v249, %v248
        %s252 = scalar_lea.vmem %s179, 12 [#allocation5]
        %253 = vst.msk [vmem:[%s252] sm:$0xf] %vm201, %v250
        %v254 = vld [vmem:[%s161 + $0x4] sm:$0x1]
        %v255 = vld [vmem:[%s161 + $0x14] sm:$0x1]
        %v256 = vld [vmem:[%s161 + $0x24] sm:$0x1]
        %v257 = vld [vmem:[%s161 + $0x34] sm:$0x1]
        %v262 = vrot.slane %v255, 7
        %v263 = vsel %vm192, %v262, %v254
        %v264 = vrot.slane %v256, 6
        %v265 = vsel %vm195, %v264, %v263
        %v266 = vrot.slane %v257, 5
        %v267 = vsel %vm198, %v266, %v265
        %s269 = scalar_lea.vmem %s179, 16 [#allocation5]
        %270 = vst.msk [vmem:[%s269] sm:$0xf] %vm201, %v267
        %v271 = vld [vmem:[%s161 + $0x5] sm:$0x1]
        %v272 = vld [vmem:[%s161 + $0x15] sm:$0x1]
        %v273 = vld [vmem:[%s161 + $0x25] sm:$0x1]
        %v274 = vld [vmem:[%s161 + $0x35] sm:$0x1]
        %v279 = vrot.slane %v272, 7
        %v280 = vsel %vm192, %v279, %v271
        %v281 = vrot.slane %v273, 6
        %v282 = vsel %vm195, %v281, %v280
        %v283 = vrot.slane %v274, 5
        %v284 = vsel %vm198, %v283, %v282
        %s286 = scalar_lea.vmem %s179, 20 [#allocation5]
        %287 = vst.msk [vmem:[%s286] sm:$0xf] %vm201, %v284
        %v288 = vld [vmem:[%s161 + $0x6] sm:$0x1]
        %v289 = vld [vmem:[%s161 + $0x16] sm:$0x1]
        %v290 = vld [vmem:[%s161 + $0x26] sm:$0x1]
        %v291 = vld [vmem:[%s161 + $0x36] sm:$0x1]
        %v296 = vrot.slane %v289, 7
        %v297 = vsel %vm192, %v296, %v288
        %v298 = vrot.slane %v290, 6
        %v299 = vsel %vm195, %v298, %v297
        %v300 = vrot.slane %v291, 5
        %v301 = vsel %vm198, %v300, %v299
        %s303 = scalar_lea.vmem %s179, 24 [#allocation5]
        %304 = vst.msk [vmem:[%s303] sm:$0xf] %vm201, %v301
        %v305 = vld [vmem:[%s161 + $0x7] sm:$0x1]
        %v306 = vld [vmem:[%s161 + $0x17] sm:$0x1]
        %v307 = vld [vmem:[%s161 + $0x27] sm:$0x1]
        %v308 = vld [vmem:[%s161 + $0x37] sm:$0x1]
        %v313 = vrot.slane %v306, 7
        %v314 = vsel %vm192, %v313, %v305
        %v315 = vrot.slane %v307, 6
        %v316 = vsel %vm195, %v315, %v314
        %v317 = vrot.slane %v308, 5
        %v318 = vsel %vm198, %v317, %v316
        %s320 = scalar_lea.vmem %s179, 28 [#allocation5]
        %321 = vst.msk [vmem:[%s320] sm:$0xf] %vm201, %v318
        %v322 = vld [vmem:[%s161 + $0x8] sm:$0x1]
        %v323 = vld [vmem:[%s161 + $0x18] sm:$0x1]
        %v324 = vld [vmem:[%s161 + $0x28] sm:$0x1]
        %v325 = vld [vmem:[%s161 + $0x38] sm:$0x1]
        %v330 = vrot.slane %v323, 7
        %v331 = vsel %vm192, %v330, %v322
        %v332 = vrot.slane %v324, 6
        %v333 = vsel %vm195, %v332, %v331
        %v334 = vrot.slane %v325, 5
        %v335 = vsel %vm198, %v334, %v333
        %s337 = scalar_lea.vmem %s179, 32 [#allocation5]
        %338 = vst.msk [vmem:[%s337] sm:$0xf] %vm201, %v335
        %v339 = vld [vmem:[%s161 + $0x9] sm:$0x1]
        %v340 = vld [vmem:[%s161 + $0x19] sm:$0x1]
        %v341 = vld [vmem:[%s161 + $0x29] sm:$0x1]
        %v342 = vld [vmem:[%s161 + $0x39] sm:$0x1]
        %v347 = vrot.slane %v340, 7
        %v348 = vsel %vm192, %v347, %v339
        %v349 = vrot.slane %v341, 6
        %v350 = vsel %vm195, %v349, %v348
        %v351 = vrot.slane %v342, 5
        %v352 = vsel %vm198, %v351, %v350
        %s354 = scalar_lea.vmem %s179, 36 [#allocation5]
        %355 = vst.msk [vmem:[%s354] sm:$0xf] %vm201, %v352
        %v356 = vld [vmem:[%s161 + $0xa] sm:$0x1]
        %v357 = vld [vmem:[%s161 + $0x1a] sm:$0x1]
        %v358 = vld [vmem:[%s161 + $0x2a] sm:$0x1]
        %v359 = vld [vmem:[%s161 + $0x3a] sm:$0x1]
        %v364 = vrot.slane %v357, 7
        %v365 = vsel %vm192, %v364, %v356
        %v366 = vrot.slane %v358, 6
        %v367 = vsel %vm195, %v366, %v365
        %v368 = vrot.slane %v359, 5
        %v369 = vsel %vm198, %v368, %v367
        %s371 = scalar_lea.vmem %s179, 40 [#allocation5]
        %372 = vst.msk [vmem:[%s371] sm:$0xf] %vm201, %v369
        %v373 = vld [vmem:[%s161 + $0xb] sm:$0x1]
        %v374 = vld [vmem:[%s161 + $0x1b] sm:$0x1]
        %v375 = vld [vmem:[%s161 + $0x2b] sm:$0x1]
        %v376 = vld [vmem:[%s161 + $0x3b] sm:$0x1]
        %v381 = vrot.slane %v374, 7
        %v382 = vsel %vm192, %v381, %v373
        %v383 = vrot.slane %v375, 6
        %v384 = vsel %vm195, %v383, %v382
        %v385 = vrot.slane %v376, 5
        %v386 = vsel %vm198, %v385, %v384
        %s388 = scalar_lea.vmem %s179, 44 [#allocation5]
        %389 = vst.msk [vmem:[%s388] sm:$0xf] %vm201, %v386
        %v390 = vld [vmem:[%s161 + $0xc] sm:$0x1]
        %v391 = vld [vmem:[%s161 + $0x1c] sm:$0x1]
        %v392 = vld [vmem:[%s161 + $0x2c] sm:$0x1]
        %v393 = vld [vmem:[%s161 + $0x3c] sm:$0x1]
        %v398 = vrot.slane %v391, 7
        %v399 = vsel %vm192, %v398, %v390
        %v400 = vrot.slane %v392, 6
        %v401 = vsel %vm195, %v400, %v399
        %v402 = vrot.slane %v393, 5
        %v403 = vsel %vm198, %v402, %v401
        %s405 = scalar_lea.vmem %s179, 48 [#allocation5]
        %406 = vst.msk [vmem:[%s405] sm:$0xf] %vm201, %v403
        %v407 = vld [vmem:[%s161 + $0xd] sm:$0x1]
        %v408 = vld [vmem:[%s161 + $0x1d] sm:$0x1]
        %v409 = vld [vmem:[%s161 + $0x2d] sm:$0x1]
        %v410 = vld [vmem:[%s161 + $0x3d] sm:$0x1]
        %v415 = vrot.slane %v408, 7
        %v416 = vsel %vm192, %v415, %v407
        %v417 = vrot.slane %v409, 6
        %v418 = vsel %vm195, %v417, %v416
        %v419 = vrot.slane %v410, 5
        %v420 = vsel %vm198, %v419, %v418
        %s422 = scalar_lea.vmem %s179, 52 [#allocation5]
        %423 = vst.msk [vmem:[%s422] sm:$0xf] %vm201, %v420
        %v424 = vld [vmem:[%s161 + $0xe] sm:$0x1]
        %v425 = vld [vmem:[%s161 + $0x1e] sm:$0x1]
        %v426 = vld [vmem:[%s161 + $0x2e] sm:$0x1]
        %v427 = vld [vmem:[%s161 + $0x3e] sm:$0x1]
        %v432 = vrot.slane %v425, 7
        %v433 = vsel %vm192, %v432, %v424
        %v434 = vrot.slane %v426, 6
        %v435 = vsel %vm195, %v434, %v433
        %v436 = vrot.slane %v427, 5
        %v437 = vsel %vm198, %v436, %v435
        %s439 = scalar_lea.vmem %s179, 56 [#allocation5]
        %440 = vst.msk [vmem:[%s439] sm:$0xf] %vm201, %v437
        %v441 = vld [vmem:[%s161 + $0xf] sm:$0x1]
        %v442 = vld [vmem:[%s161 + $0x1f] sm:$0x1]
        %v443 = vld [vmem:[%s161 + $0x2f] sm:$0x1]
        %v444 = vld [vmem:[%s161 + $0x3f] sm:$0x1]
        %v449 = vrot.slane %v442, 7
        %v450 = vsel %vm192, %v449, %v441
        %v451 = vrot.slane %v443, 6
        %v452 = vsel %vm195, %v451, %v450
        %v453 = vrot.slane %v444, 5
        %v454 = vsel %vm198, %v453, %v452
        %s456 = scalar_lea.vmem %s179, 60 [#allocation5]
        %457 = vst.msk [vmem:[%s456] sm:$0xf] %vm201, %v454
        %s458 = sand.u32 %s90, 1
        %s459 = scalar_lea.sflag [#allocation4], %s458
        %s460 = sand.u32 %s90, 1
        %s461 = smul.addr %s460, 64
        %s462 = scalar_lea.vmem [#allocation5], %s461
        // Predicated region
        $region29: #{tpu_custom_call.1} parent=23 // pred_check
          %p463 = pneg %p100
        $region30: #{tpu_custom_call.1} parent=23 // pred_check_branch
          %465 = sbr.rel (%p463) target = $region32
        $region31: #{tpu_custom_call.1} parent=23 // pred_region
          %s466 = smul.u32 16, %s27
          %s468 = ssub.s32 1024, 1024
          %469 = vsyncadd %s459, %s468
          %s470 = sadd.s32 %s26, %s25
          %s471 = sadd.s32 %s470, %s466
          %s472 = smul.addr %s24, 16
          %s473 = sadd.s32 %s471, %s472
          %s474 = smul.addr %s473, 64
          %s475 = scalar_lea.hbm %s1, %s474
          %s476 = sshll.u32 %s462, 4
          %s477 = int_to_ptr.vmem [resolvable:$true] %s476
          %482 = dma.vmem_to_hbm [thread:$0]  %s477, 1024, %s475, %s459, 64, 64, 4
        $region32: #{tpu_custom_call.1} parent=23 // pred_fallthru
          _
      $region24: #{tpu_custom_call.1} parent=5 // pred_fallthru
        _
      %p483 = scmp.le.s32.totalorder 2, %s13
      // Predicated region
      $region33: #{tpu_custom_call.1} parent=5 // pred_check
        %p484 = pneg %p483
      $region34: #{tpu_custom_call.1} parent=5 // pred_check_branch
        %486 = sbr.rel (%p484) target = $region36
      $region35: #{tpu_custom_call.1} parent=5 // pred_region
        %s487 = ssub.s32 %s13, 2
        // Predicated region
        $region37: #{tpu_custom_call.1} parent=35 // pred_check
          %p488 = pneg %p106
        $region38: #{tpu_custom_call.1} parent=35 // pred_check_branch
          %490 = sbr.rel (%p488) target = $region40
        $region39: #{tpu_custom_call.1} parent=35 // pred_region
          %s491 = sand.u32 %s91, 1
          %s492 = scalar_lea.sflag [#allocation4], %s491
          %s493 = sand.u32 %s91, 1
          %s494 = smul.addr %s493, 64
          %s495 = scalar_lea.vmem [#allocation5], %s494
          %496 = dma.done %s492, 1024
        $region40: #{tpu_custom_call.1} parent=35 // pred_fallthru
          _
      $region36: #{tpu_custom_call.1} parent=5 // pred_fallthru
        _
    $region6: #{tpu_custom_call.1} parent=1 // loop_footer
      %s17 = sadd.s32 1, %s13
    $region7: #{tpu_custom_call.1} parent=1 // loop_footer_branch
      %12 = sbr.rel target = $region3
    $region8: #{tpu_custom_call.1} parent=1 // loop_exit
      _
    %497 = vsyncpa [#allocation3], 1
    %s498 = scalar_lea.sflag [#allocation3], 1
    %499 = vsyncpa %s498, 1
    %500 = vsyncpa [#allocation4], 1
    %s501 = scalar_lea.sflag [#allocation4], 1
    %502 = vsyncpa %s501, 1

</llo_original>
